<compile_context>
chip_gen: v7x
topology: tpu7x:2x2x1
jax: 0.10.0
libtpu: 0.0.40
codegen_flags: <defaults>
</compile_context>

<pallas_src>
import jax
import jax.numpy as jnp
from jax.experimental import pallas as pl
from jax.experimental.pallas import tpu as pltpu


def _round_up(x, m):
    return (x + m - 1) // m * m


def fusion_kernel(t_ref, i_ref, wt_ref, wi_ref, b_ref, o_ref):
    # Both matmuls hit the MXU; accumulate in f32, bias add in f32.
    acc = jnp.dot(t_ref[...], wt_ref[...], preferred_element_type=jnp.float32)
    acc = acc + jnp.dot(i_ref[...], wi_ref[...], preferred_element_type=jnp.float32)
    acc = acc + b_ref[...].astype(jnp.float32)      # (1, Dp) broadcasts over rows
    o_ref[...] = acc.astype(o_ref.dtype)


def prepare_fusion_params(weight, bias):
    """One-time parameter preprocessing (do at load time, NOT per call).

    weight: (D, 2D) in PyTorch nn.Linear layout, bias: (D,).
    Returns lane-padded (Dp, Dp) split weights and a (1, Dp) bias.
    """
    D = weight.shape[0]
    Dp = _round_up(D, 128)
    w_t = weight[:, :D].T            # (D, D)
    w_i = weight[:, D:].T            # (D, D)
    pad = Dp - D
    if pad:
        w_t = jnp.pad(w_t, ((0, pad), (0, pad)))
        w_i = jnp.pad(w_i, ((0, pad), (0, pad)))
        bias = jnp.pad(bias, (0, pad))
    return w_t, w_i, bias.reshape(1, Dp)


def feature_fusion(text, img, w_t, w_i, bias2, *, tm=None):
    """text, img: (B, S, D); w_t/w_i/bias2: outputs of prepare_fusion_params."""
    B, S, D = text.shape
    M = B * S
    Dp = w_t.shape[0]
    itemsize = jnp.dtype(text.dtype).itemsize

    # --- choose TM so the per-step working set fits the 32 MiB scoped default ---
    if tm is None:
        vmem_budget = 28 * 1024 * 1024
        # resident weights + bias (counted double-buffered, conservatively)
        weight_bytes = 2 * (2 * Dp * Dp + Dp) * itemsize
        per_row = 2 * 3 * Dp * itemsize        # 2 bufs x (text + img + out) rows
        avail = max(vmem_budget - weight_bytes, per_row * 8)
        tm = int(min(1024, max(8, avail // per_row)))
        tm = (tm // 8) * 8
    tm = min(tm, _round_up(M, 8))              # don't tile past the data
    tm = _round_up(tm, 8)
    Mp = _round_up(M, tm)

    # --- pad activations to (Mp, Dp): lane-dense, (8,128)-legal blocks ---
    t2 = text.reshape(M, D)
    i2 = img.reshape(M, D)
    if Mp != M or Dp != D:
        t2 = jnp.pad(t2, ((0, Mp - M), (0, Dp - D)))
        i2 = jnp.pad(i2, ((0, Mp - M), (0, Dp - D)))

    grid = (Mp // tm,)
    row_spec = pl.BlockSpec((tm, Dp), lambda i: (i, 0))
    resident = lambda shape: pl.BlockSpec(shape, lambda i: (0, 0))

    cost = pl.CostEstimate(
        flops=2 * Mp * Dp * (2 * Dp),
        transcendentals=0,
        bytes_accessed=(3 * Mp * Dp + 2 * Dp * Dp + Dp) * itemsize,
    )

    out = pl.pallas_call(
        fusion_kernel,
        out_shape=jax.ShapeDtypeStruct((Mp, Dp), text.dtype),
        grid=grid,
        in_specs=[row_spec,                  # text rows   (TM, Dp)
                  row_spec,                  # img rows    (TM, Dp)
                  resident((Dp, Dp)),        # W_text      (resident)
                  resident((Dp, Dp)),        # W_img       (resident)
                  resident((1, Dp))],        # bias        (resident)
        out_specs=row_spec,
        compiler_params=pltpu.CompilerParams(
            dimension_semantics=("parallel",)),
        cost_estimate=cost,
    )(t2, i2, w_t, w_i, bias2)

    return out[:M, :D].reshape(B, S, D)


if __name__ == "__main__":
    B, S, D = 2, 8, 32
    key = jax.random.PRNGKey(0)
    k_t, k_i, k_w, k_b = jax.random.split(key, 4)

    text = jax.random.normal(k_t, (B, S, D), dtype=jnp.float32)
    img = jax.random.normal(k_i, (B, S, D), dtype=jnp.float32)

    # nn.Linear(2D, D) parameters: weight (D, 2D), bias (D,)
    bound = 1.0 / jnp.sqrt(2.0 * D)
    weight = jax.random.uniform(k_w, (D, 2 * D), minval=-bound, maxval=bound,
                                dtype=jnp.float32)
    bias = jax.random.uniform(k_b, (D,), minval=-bound, maxval=bound,
                              dtype=jnp.float32)

    # One-time param prep (hoisted out of the per-call path).
    w_t, w_i, bias2 = prepare_fusion_params(weight, bias)

    out = feature_fusion(text, img, w_t, w_i, bias2)
    out = jax.block_until_ready(out)

    # Pure-JAX reference (semantics of torch.cat + nn.Linear).
    ref = jnp.concatenate([text, img], axis=-1) @ weight.T + bias
    assert out.shape == (B, S, D)
    assert jnp.allclose(out, ref, atol=1e-5, rtol=1e-5), "mismatch vs reference"
    print("KERNEL_OK")
</pallas_src>

<mosaic_0001>
module attributes {stable_mosaic.version = 11 : i64} {
  func.func @fusion_kernel(%arg0: i32, %arg1: memref<16x128xf32, #tpu.memory_space<vmem>>, %arg2: memref<16x128xf32, #tpu.memory_space<vmem>>, %arg3: memref<128x128xf32, #tpu.memory_space<vmem>>, %arg4: memref<128x128xf32, #tpu.memory_space<vmem>>, %arg5: memref<1x128xf32, #tpu.memory_space<vmem>>, %arg6: memref<16x128xf32, #tpu.memory_space<vmem>>) attributes {dimension_semantics = [#tpu.dimension_semantics<parallel>], iteration_bounds = array<i64: 1>, scalar_prefetch = 0 : i64, scratch_operands = 0 : i64, tpu.core_type = #tpu.core_type<tc>, window_params = [{transform_indices = @transform_0, window_bounds = array<i64: 16, 128>}, {transform_indices = @transform_1, window_bounds = array<i64: 16, 128>}, {pipeline_mode = #tpu.pipeline_mode<synchronous>, transform_indices = @transform_2, window_bounds = array<i64: 128, 128>}, {pipeline_mode = #tpu.pipeline_mode<synchronous>, transform_indices = @transform_3, window_bounds = array<i64: 128, 128>}, {pipeline_mode = #tpu.pipeline_mode<synchronous>, transform_indices = @transform_4, window_bounds = array<i64: 1, 128>}, {transform_indices = @transform_5, window_bounds = array<i64: 16, 128>}]} {
    %c0 = arith.constant 0 : index
    %c0_0 = arith.constant 0 : index
    %0 = vector.load %arg1[%c0, %c0_0] : memref<16x128xf32, #tpu.memory_space<vmem>>, vector<16x128xf32>
    %c0_1 = arith.constant 0 : index
    %c0_2 = arith.constant 0 : index
    %1 = vector.load %arg3[%c0_1, %c0_2] : memref<128x128xf32, #tpu.memory_space<vmem>>, vector<128x128xf32>
    %cst = arith.constant dense<0.000000e+00> : vector<16x128xf32>
    %2 = tpu.matmul %0, %1, %cst {dimension_numbers = #tpu.dot_dimension_numbers<[1], [0], [0], [1], [0, 0, 1, 1], [], []>} : vector<16x128xf32>, vector<128x128xf32>, vector<16x128xf32> -> vector<16x128xf32>
    %c0_3 = arith.constant 0 : index
    %c0_4 = arith.constant 0 : index
    %3 = vector.load %arg2[%c0_3, %c0_4] : memref<16x128xf32, #tpu.memory_space<vmem>>, vector<16x128xf32>
    %c0_5 = arith.constant 0 : index
    %c0_6 = arith.constant 0 : index
    %4 = vector.load %arg4[%c0_5, %c0_6] : memref<128x128xf32, #tpu.memory_space<vmem>>, vector<128x128xf32>
    %cst_7 = arith.constant dense<0.000000e+00> : vector<16x128xf32>
    %5 = tpu.matmul %3, %4, %cst_7 {dimension_numbers = #tpu.dot_dimension_numbers<[1], [0], [0], [1], [0, 0, 1, 1], [], []>} : vector<16x128xf32>, vector<128x128xf32>, vector<16x128xf32> -> vector<16x128xf32>
    %6 = arith.addf %2, %5 : vector<16x128xf32>
    %c0_8 = arith.constant 0 : index
    %c0_9 = arith.constant 0 : index
    %7 = vector.load %arg5[%c0_8, %c0_9] : memref<1x128xf32, #tpu.memory_space<vmem>>, vector<1x128xf32>
    %8 = vector.broadcast %7 : vector<1x128xf32> to vector<16x128xf32>
    %9 = arith.addf %6, %8 : vector<16x128xf32>
    %c0_10 = arith.constant 0 : index
    %c0_11 = arith.constant 0 : index
    %10 = vector.load %arg6[%c0_10, %c0_11] : memref<16x128xf32, #tpu.memory_space<vmem>>, vector<16x128xf32>
    tpu.vector_store %arg6[%c0_10, %c0_11], %9 {strides = array<i32>} : memref<16x128xf32, #tpu.memory_space<vmem>>, vector<16x128xf32>,
    return
  }
  func.func @transform_0(%arg0: i32) -> (i32, i32) {
    %c0_i32 = arith.constant 0 : i32
    %c0_i32_0 = arith.constant 0 : i32
    return %arg0, %c0_i32 : i32, i32
  }
  func.func @transform_1(%arg0: i32) -> (i32, i32) {
    %c0_i32 = arith.constant 0 : i32
    %c0_i32_0 = arith.constant 0 : i32
    return %arg0, %c0_i32 : i32, i32
  }
  func.func @transform_2(%arg0: i32) -> (i32, i32) {
    %c0_i32 = arith.constant 0 : i32
    %c0_i32_0 = arith.constant 0 : i32
    %c0_i32_1 = arith.constant 0 : i32
    return %c0_i32, %c0_i32_0 : i32, i32
  }
  func.func @transform_3(%arg0: i32) -> (i32, i32) {
    %c0_i32 = arith.constant 0 : i32
    %c0_i32_0 = arith.constant 0 : i32
    %c0_i32_1 = arith.constant 0 : i32
    return %c0_i32, %c0_i32_0 : i32, i32
  }
  func.func @transform_4(%arg0: i32) -> (i32, i32) {
    %c0_i32 = arith.constant 0 : i32
    %c0_i32_0 = arith.constant 0 : i32
    %c0_i32_1 = arith.constant 0 : i32
    return %c0_i32, %c0_i32_0 : i32, i32
  }
  func.func @transform_5(%arg0: i32) -> (i32, i32) {
    %c0_i32 = arith.constant 0 : i32
    %c0_i32_0 = arith.constant 0 : i32
    return %arg0, %c0_i32 : i32, i32
  }
}

</mosaic_0001>

<llo_original>
// kernel: tpu_custom_call.1
$region0: #{tpu_custom_call.1}
  #allocation0 [shape = 'u32[]', space=smem, size = 0x4, offset = 0x4, fixed_abs, tag = 'smem constant byte address 0x4 - core index']
  #allocation1 [shape = 'u32[144,128]{1,0:T(1,128)}', space=vmem, size = 0x12000, scoped, tag = 'internal scratch']
  %s0 = inlined_call_operand.hbm [shape: f32[16,128], index: 0, kind: input, shape index: {}]
  %s1 = inlined_call_operand.hbm [shape: f32[16,128], index: 1, kind: input, shape index: {}]
  %s2 = inlined_call_operand.hbm [shape: f32[128,128], index: 2, kind: input, shape index: {}]
  %s3 = inlined_call_operand.hbm [shape: f32[128,128], index: 3, kind: input, shape index: {}]
  %s4 = inlined_call_operand.vmem [shape: f32[1,128], index: 4, kind: input, shape index: {}]
  %s5 = inlined_call_operand.hbm [shape: f32[16,128], index: 5, kind: output, shape index: {}]
  %s6 = sld [smem:[#allocation0]]
  $region46: #{tpu_custom_call.1} parent=0
    _
  %s8 = ssub.s32 1, %s6
  %s9 = scalar_select 0, %s8, %s6
  $region1: #{tpu_custom_call.1} parent=0
    #allocation2 [shape = 'u8[8192]{0}', space=vmem, size = 0x2000, scoped, tag = 'input window, operand 0, single buffered']
    #allocation3 [shape = 's32[1]{0}', space=sflag, size = 0x4, scoped, tag = 'scoped memory for tpu_custom_call.1']
    #allocation4 [shape = 's32[1]{0}', space=sflag, size = 0x4, scoped, tag = 'scoped memory for tpu_custom_call.1']
    #allocation5 [shape = 'u8[8192]{0}', space=vmem, size = 0x2000, scoped, tag = 'input window, operand 1, single buffered']
    #allocation6 [shape = 's32[1]{0}', space=sflag, size = 0x4, scoped, tag = 'scoped memory for tpu_custom_call.1']
    #allocation7 [shape = 'u8[65536]{0}', space=vmem, size = 0x10000, scoped, tag = 'input window, operand 2, single buffered']
    #allocation8 [shape = 'u8[65536]{0}', space=vmem, size = 0x10000, scoped, tag = 'input window, operand 3, single buffered']
    #allocation9 [shape = 's32[1]{0}', space=sflag, size = 0x4, scoped, tag = 'scoped memory for tpu_custom_call.1']
    #allocation10 [shape = 'u8[8192]{0}', space=vmem, size = 0x2000, scoped, tag = 'output window, operand 0, single buffered']
    %10 = vsyncpa [#allocation3], 0
    %11 = vsyncpa [#allocation6], 0
    %12 = vsyncpa [#allocation9], 0
    %13 = vsyncpa [#allocation4], 0
    // Predicated region
    $region2: #{tpu_custom_call.1} parent=1 // pred_check
      _
    $region3: #{tpu_custom_call.1} parent=1 // pred_check_branch
      %15 = sbr.rel (0) target = $region5
    $region4: #{tpu_custom_call.1} parent=1 // pred_region
      %s17 = ssub.s32 256, 256
      %18 = vsyncadd [#allocation3], %s17
      %s19 = sshll.u32 [#allocation2], 4
      %s20 = int_to_ptr.vmem [resolvable:$true] %s19
      %25 = dma.hbm_to_vmem [thread:$0]  %s0, 256, %s20, [#allocation3], 128, 128, 8
    $region5: #{tpu_custom_call.1} parent=1 // pred_fallthru
      _
    // Predicated region
    $region6: #{tpu_custom_call.1} parent=1 // pred_check
      _
    $region7: #{tpu_custom_call.1} parent=1 // pred_check_branch
      %27 = sbr.rel (0) target = $region9
    $region8: #{tpu_custom_call.1} parent=1 // pred_region
      %s29 = ssub.s32 256, 256
      %30 = vsyncadd [#allocation6], %s29
      %s31 = sshll.u32 [#allocation5], 4
      %s32 = int_to_ptr.vmem [resolvable:$true] %s31
      %37 = dma.hbm_to_vmem [thread:$0]  %s1, 256, %s32, [#allocation6], 128, 128, 8
    $region9: #{tpu_custom_call.1} parent=1 // pred_fallthru
      _
    // Predicated region
    $region10: #{tpu_custom_call.1} parent=1 // pred_check
      _
    $region11: #{tpu_custom_call.1} parent=1 // pred_check_branch
      %39 = sbr.rel (0) target = $region13
    $region12: #{tpu_custom_call.1} parent=1 // pred_region
      %s41 = ssub.s32 2048, 2048
      %42 = vsyncadd [#allocation6], %s41
      %s43 = sshll.u32 [#allocation7], 4
      %s44 = int_to_ptr.vmem [resolvable:$true] %s43
      %49 = dma.hbm_to_vmem [thread:$0]  %s2, 2048, %s44, [#allocation6], 128, 128, 8
    $region13: #{tpu_custom_call.1} parent=1 // pred_fallthru
      _
    // Predicated region
    $region14: #{tpu_custom_call.1} parent=1 // pred_check
      _
    $region15: #{tpu_custom_call.1} parent=1 // pred_check_branch
      %51 = sbr.rel (0) target = $region17
    $region16: #{tpu_custom_call.1} parent=1 // pred_region
      %s53 = ssub.s32 2048, 2048
      %54 = vsyncadd [#allocation9], %s53
      %s55 = sshll.u32 [#allocation8], 4
      %s56 = int_to_ptr.vmem [resolvable:$true] %s55
      %61 = dma.hbm_to_vmem [thread:$0]  %s3, 2048, %s56, [#allocation9], 128, 128, 8
    $region17: #{tpu_custom_call.1} parent=1 // pred_fallthru
      _
    // Predicated region
    $region18: #{tpu_custom_call.1} parent=1 // pred_check
      _
    $region19: #{tpu_custom_call.1} parent=1 // pred_check_branch
      %63 = sbr.rel (0) target = $region21
    $region20: #{tpu_custom_call.1} parent=1 // pred_region
      _
    $region21: #{tpu_custom_call.1} parent=1 // pred_fallthru
      _
    // Predicated region
    $region22: #{tpu_custom_call.1} parent=1 // pred_check
      _
    $region23: #{tpu_custom_call.1} parent=1 // pred_check_branch
      %65 = sbr.rel (0) target = $region25
    $region24: #{tpu_custom_call.1} parent=1 // pred_region
      %66 = dma.done [#allocation3], 256
    $region25: #{tpu_custom_call.1} parent=1 // pred_fallthru
      _
    // Predicated region
    $region26: #{tpu_custom_call.1} parent=1 // pred_check
      _
    $region27: #{tpu_custom_call.1} parent=1 // pred_check_branch
      %68 = sbr.rel (0) target = $region29
    $region28: #{tpu_custom_call.1} parent=1 // pred_region
      %69 = dma.done [#allocation6], 256
    $region29: #{tpu_custom_call.1} parent=1 // pred_fallthru
      _
    // Predicated region
    $region30: #{tpu_custom_call.1} parent=1 // pred_check
      _
    $region31: #{tpu_custom_call.1} parent=1 // pred_check_branch
      %71 = sbr.rel (0) target = $region33
    $region32: #{tpu_custom_call.1} parent=1 // pred_region
      %72 = dma.done [#allocation6], 2048
    $region33: #{tpu_custom_call.1} parent=1 // pred_fallthru
      _
    // Predicated region
    $region34: #{tpu_custom_call.1} parent=1 // pred_check
      _
    $region35: #{tpu_custom_call.1} parent=1 // pred_check_branch
      %74 = sbr.rel (0) target = $region37
    $region36: #{tpu_custom_call.1} parent=1 // pred_region
      %75 = dma.done [#allocation9], 2048
    $region37: #{tpu_custom_call.1} parent=1 // pred_fallthru
      _
    %v76 = vld [vmem:[#allocation2] sm:$0xff]
    %v77 = vld [vmem:[#allocation2 + $0x8] sm:$0xff]
    %v78 = vld [vmem:[#allocation7] sm:$0xff]
    %v79 = vld [vmem:[#allocation7 + $0x8] sm:$0xff]
    %v80 = vld [vmem:[#allocation7 + $0x10] sm:$0xff]
    %v81 = vld [vmem:[#allocation7 + $0x18] sm:$0xff]
    %v82 = vld [vmem:[#allocation7 + $0x20] sm:$0xff]
    %v83 = vld [vmem:[#allocation7 + $0x28] sm:$0xff]
    %v84 = vld [vmem:[#allocation7 + $0x30] sm:$0xff]
    %v85 = vld [vmem:[#allocation7 + $0x38] sm:$0xff]
    %v86 = vld [vmem:[#allocation7 + $0x40] sm:$0xff]
    %v87 = vld [vmem:[#allocation7 + $0x48] sm:$0xff]
    %v88 = vld [vmem:[#allocation7 + $0x50] sm:$0xff]
    %v89 = vld [vmem:[#allocation7 + $0x58] sm:$0xff]
    %v90 = vld [vmem:[#allocation7 + $0x60] sm:$0xff]
    %v91 = vld [vmem:[#allocation7 + $0x68] sm:$0xff]
    %v92 = vld [vmem:[#allocation7 + $0x70] sm:$0xff]
    %v93 = vld [vmem:[#allocation7 + $0x78] sm:$0xff]
    %v94 = vld [vmem:[#allocation5] sm:$0xff]
    %v95 = vld [vmem:[#allocation5 + $0x8] sm:$0xff]
    %v96 = vld [vmem:[#allocation8] sm:$0xff]
    %v97 = vld [vmem:[#allocation8 + $0x8] sm:$0xff]
    %v98 = vld [vmem:[#allocation8 + $0x10] sm:$0xff]
    %v99 = vld [vmem:[#allocation8 + $0x18] sm:$0xff]
    %v100 = vld [vmem:[#allocation8 + $0x20] sm:$0xff]
    %v101 = vld [vmem:[#allocation8 + $0x28] sm:$0xff]
    %v102 = vld [vmem:[#allocation8 + $0x30] sm:$0xff]
    %v103 = vld [vmem:[#allocation8 + $0x38] sm:$0xff]
    %v104 = vld [vmem:[#allocation8 + $0x40] sm:$0xff]
    %v105 = vld [vmem:[#allocation8 + $0x48] sm:$0xff]
    %v106 = vld [vmem:[#allocation8 + $0x50] sm:$0xff]
    %v107 = vld [vmem:[#allocation8 + $0x58] sm:$0xff]
    %v108 = vld [vmem:[#allocation8 + $0x60] sm:$0xff]
    %v109 = vld [vmem:[#allocation8 + $0x68] sm:$0xff]
    %v110 = vld [vmem:[#allocation8 + $0x70] sm:$0xff]
    %v111 = vld [vmem:[#allocation8 + $0x78] sm:$0xff]
    %112 = vmatprep.subr.mxu0 0.0
    %113 = vmatpush1.msra.mxu0 %v96
    %114 = vmatprep.subr.mxu0 0.0
    %115 = vmatpush1.msra.mxu0 %v97
    %116 = vmatprep.subr.mxu0 0.0
    %117 = vmatpush1.msra.mxu0 %v98
    %118 = vmatprep.subr.mxu0 0.0
    %119 = vmatpush1.msra.mxu0 %v99
    %120 = vmatprep.subr.mxu0 0.0
    %121 = vmatpush1.msra.mxu0 %v100
    %122 = vmatprep.subr.mxu0 0.0
    %123 = vmatpush1.msra.mxu0 %v101
    %124 = vmatprep.subr.mxu0 0.0
    %125 = vmatpush1.msra.mxu0 %v102
    %126 = vmatprep.subr.mxu0 0.0
    %127 = vmatpush1.msra.mxu0 %v103
    %128 = vmatprep.subr.mxu0 0.0
    %129 = vmatpush1.msra.mxu0 %v104
    %130 = vmatprep.subr.mxu0 0.0
    %131 = vmatpush1.msra.mxu0 %v105
    %132 = vmatprep.subr.mxu0 0.0
    %133 = vmatpush1.msra.mxu0 %v106
    %134 = vmatprep.subr.mxu0 0.0
    %135 = vmatpush1.msra.mxu0 %v107
    %136 = vmatprep.subr.mxu0 0.0
    %137 = vmatpush1.msra.mxu0 %v108
    %138 = vmatprep.subr.mxu0 0.0
    %139 = vmatpush1.msra.mxu0 %v109
    %140 = vmatprep.subr.mxu0 0.0
    %141 = vmatpush1.msra.mxu0 %v110
    %142 = vmatprep.subr.mxu0 0.0
    %143 = vmatpush1.msra.mxu0 %v111
    %144 = vmatprep.subr.mxu0 0.0
    %145 = vmatpush1.msra.mxu0 0.0
    %146 = vmatprep.subr.mxu0 0.0
    %147 = vmatpush1.msra.mxu0 0.0
    %148 = vmatprep.subr.mxu0 0.0
    %149 = vmatpush1.msra.mxu0 0.0
    %150 = vmatprep.subr.mxu0 0.0
    %151 = vmatpush1.msra.mxu0 0.0
    %152 = vmatprep.subr.mxu0 0.0
    %153 = vmatpush1.msra.mxu0 0.0
    %154 = vmatprep.subr.mxu0 0.0
    %155 = vmatpush1.msra.mxu0 0.0
    %156 = vmatprep.subr.mxu0 0.0
    %157 = vmatpush1.msra.mxu0 0.0
    %158 = vmatprep.subr.mxu0 0.0
    %159 = vmatpush1.msra.mxu0 0.0
    %160 = vmatprep.subr.mxu0 0.0
    %161 = vmatpush1.msra.mxu0 0.0
    %162 = vmatprep.subr.mxu0 0.0
    %163 = vmatpush1.msra.mxu0 0.0
    %164 = vmatprep.subr.mxu0 0.0
    %165 = vmatpush1.msra.mxu0 0.0
    %166 = vmatprep.subr.mxu0 0.0
    %167 = vmatpush1.msra.mxu0 0.0
    %168 = vmatprep.subr.mxu0 0.0
    %169 = vmatpush1.msra.mxu0 0.0
    %170 = vmatprep.subr.mxu0 0.0
    %171 = vmatpush1.msra.mxu0 0.0
    %172 = vmatprep.subr.mxu0 0.0
    %173 = vmatpush1.msra.mxu0 0.0
    %174 = vmatprep.subr.mxu0 0.0
    %175 = vmatpush1.msra.mxu0 0.0
    %176 = vmatprep.mubr.f32.mxu0 0.0
    %177 = vmatmul.mubr.f32.gmra.mrb[0].mxu0 %v94
    %v178 = vpop.f32.mrb[0].mxu0
    %v179 = vadd.f32 0.0, %v178
    %v180 = vpop.f32.mrb[0].mxu0
    %181 = vmatprep.mubr.f32.mxu0 0.0
    %182 = vmatmul.mubr.f32.gmra.mrb[0].mxu0 %v95
    %v183 = vpop.f32.mrb[0].mxu0
    %v184 = vadd.f32 0.0, %v183
    %v185 = vpop.f32.mrb[0].mxu0
    %186 = vdwg.mxu0
    %187 = vmatprep.subr.mxu0 0.0
    %188 = vmatpush1.msra.mxu0 %v78
    %189 = vmatprep.subr.mxu0 0.0
    %190 = vmatpush1.msra.mxu0 %v79
    %191 = vmatprep.subr.mxu0 0.0
    %192 = vmatpush1.msra.mxu0 %v80
    %193 = vmatprep.subr.mxu0 0.0
    %194 = vmatpush1.msra.mxu0 %v81
    %195 = vmatprep.subr.mxu0 0.0
    %196 = vmatpush1.msra.mxu0 %v82
    %197 = vmatprep.subr.mxu0 0.0
    %198 = vmatpush1.msra.mxu0 %v83
    %199 = vmatprep.subr.mxu0 0.0
    %200 = vmatpush1.msra.mxu0 %v84
    %201 = vmatprep.subr.mxu0 0.0
    %202 = vmatpush1.msra.mxu0 %v85
    %203 = vmatprep.subr.mxu0 0.0
    %204 = vmatpush1.msra.mxu0 %v86
    %205 = vmatprep.subr.mxu0 0.0
    %206 = vmatpush1.msra.mxu0 %v87
    %207 = vmatprep.subr.mxu0 0.0
    %208 = vmatpush1.msra.mxu0 %v88
    %209 = vmatprep.subr.mxu0 0.0
    %210 = vmatpush1.msra.mxu0 %v89
    %211 = vmatprep.subr.mxu0 0.0
    %212 = vmatpush1.msra.mxu0 %v90
    %213 = vmatprep.subr.mxu0 0.0
    %214 = vmatpush1.msra.mxu0 %v91
    %215 = vmatprep.subr.mxu0 0.0
    %216 = vmatpush1.msra.mxu0 %v92
    %217 = vmatprep.subr.mxu0 0.0
    %218 = vmatpush1.msra.mxu0 %v93
    %219 = vmatprep.subr.mxu0 0.0
    %220 = vmatpush1.msra.mxu0 0.0
    %221 = vmatprep.subr.mxu0 0.0
    %222 = vmatpush1.msra.mxu0 0.0
    %223 = vmatprep.subr.mxu0 0.0
    %224 = vmatpush1.msra.mxu0 0.0
    %225 = vmatprep.subr.mxu0 0.0
    %226 = vmatpush1.msra.mxu0 0.0
    %227 = vmatprep.subr.mxu0 0.0
    %228 = vmatpush1.msra.mxu0 0.0
    %229 = vmatprep.subr.mxu0 0.0
    %230 = vmatpush1.msra.mxu0 0.0
    %231 = vmatprep.subr.mxu0 0.0
    %232 = vmatpush1.msra.mxu0 0.0
    %233 = vmatprep.subr.mxu0 0.0
    %234 = vmatpush1.msra.mxu0 0.0
    %235 = vmatprep.subr.mxu0 0.0
    %236 = vmatpush1.msra.mxu0 0.0
    %237 = vmatprep.subr.mxu0 0.0
    %238 = vmatpush1.msra.mxu0 0.0
    %239 = vmatprep.subr.mxu0 0.0
    %240 = vmatpush1.msra.mxu0 0.0
    %241 = vmatprep.subr.mxu0 0.0
    %242 = vmatpush1.msra.mxu0 0.0
    %243 = vmatprep.subr.mxu0 0.0
    %244 = vmatpush1.msra.mxu0 0.0
    %245 = vmatprep.subr.mxu0 0.0
    %246 = vmatpush1.msra.mxu0 0.0
    %247 = vmatprep.subr.mxu0 0.0
    %248 = vmatpush1.msra.mxu0 0.0
    %249 = vmatprep.subr.mxu0 0.0
    %250 = vmatpush1.msra.mxu0 0.0
    %251 = vmatprep.mubr.f32.mxu0 0.0
    %252 = vmatmul.mubr.f32.gmra.mrb[0].mxu0 %v76
    %v253 = vpop.f32.mrb[0].mxu0
    %v254 = vadd.f32 %v179, %v253
    %v255 = vpop.f32.mrb[0].mxu0
    %256 = vmatprep.mubr.f32.mxu0 0.0
    %257 = vmatmul.mubr.f32.gmra.mrb[0].mxu0 %v77
    %v258 = vpop.f32.mrb[0].mxu0
    %v259 = vadd.f32 %v184, %v258
    %v260 = vpop.f32.mrb[0].mxu0
    %261 = vdwg.mxu0
    %v262 = vld [vmem:[%s4] sm:$0x1]
    %v264 = vlaneseq
    %v265 = vshrl.u32 %v264, 7
    %v266 = vsub.s32 0, %v265
    %v267 = vrot.slane %v262, %v266
    %v269 = vadd.f32 %v254, %v267
    %v270 = vadd.f32 %v259, %v267
    %271 = vst [vmem:[#allocation10] sm:$0xff] %v269
    %272 = vst [vmem:[#allocation10 + $0x8] sm:$0xff] %v270
    // Predicated region
    $region38: #{tpu_custom_call.1} parent=1 // pred_check
      _
    $region39: #{tpu_custom_call.1} parent=1 // pred_check_branch
      %274 = sbr.rel (0) target = $region41
    $region40: #{tpu_custom_call.1} parent=1 // pred_region
      %s276 = ssub.s32 256, 256
      %277 = vsyncadd [#allocation4], %s276
      %s278 = sshll.u32 [#allocation10], 4
      %s279 = int_to_ptr.vmem [resolvable:$true] %s278
      %284 = dma.vmem_to_hbm [thread:$0]  %s279, 256, %s5, [#allocation4], 128, 128, 8
    $region41: #{tpu_custom_call.1} parent=1 // pred_fallthru
      _
    // Predicated region
    $region42: #{tpu_custom_call.1} parent=1 // pred_check
      _
    $region43: #{tpu_custom_call.1} parent=1 // pred_check_branch
      %286 = sbr.rel (0) target = $region45
    $region44: #{tpu_custom_call.1} parent=1 // pred_region
      %287 = dma.done [#allocation4], 256
    $region45: #{tpu_custom_call.1} parent=1 // pred_fallthru
      _
    %288 = vsyncpa [#allocation3], 1
    %289 = vsyncpa [#allocation6], 1
    %290 = vsyncpa [#allocation9], 1
    %291 = vsyncpa [#allocation4], 1

</llo_original>
